<compile_context>
chip_gen: v5e
topology: v5e:2x2
jax: 0.10.0
libtpu: 0.0.40
codegen_flags: <defaults>
</compile_context>

<pallas_src>
import functools
import math

import jax
import jax.numpy as jnp
from jax.experimental import pallas as pl
from jax.experimental.pallas import tpu as pltpu


# ---------------------------------------------------------------------------
# Kernel: out = x + pe  (PE broadcast over the batch tile; single vadd body)
# ---------------------------------------------------------------------------
def _add_pe_kernel(x_ref, pe_ref, o_ref):
    # x_ref / o_ref block: (TB, TR, L);  pe_ref block: (TR, L)
    o_ref[...] = x_ref[...] + pe_ref[...]


# ---------------------------------------------------------------------------
# Host-side planning helpers (static shape bookkeeping)
# ---------------------------------------------------------------------------
def _sublane_granule(itemsize):
    """Native sublane packing granule per dtype width."""
    if itemsize >= 4:
        return 8
    if itemsize == 2:
        return 16
    return 32


def _plan_lane(N, max_lane=1024):
    """Lane width L (multiple of 128) and raw row count R0 = ceil(N / L)."""
    L = 128
    if N % 128 == 0:
        while L * 2 <= max_lane and N % (L * 2) == 0:
            L *= 2
    R0 = -(-N // L)
    return L, R0


def _largest_divisor_leq(n, cap):
    for d in range(min(n, max(cap, 1)), 0, -1):
        if n % d == 0:
            return d
    return 1


def _plan_tiles(B, R0, L, itemsize, g, target_bytes=2 << 20):
    """Pick (TR, TB): row tile (multiple of g or == R0) and batch tile (TB | B),
    keeping one x block around ~2 MiB (HBM-roofline knee, fits all scoped-VMEM
    defaults with double buffering of x/out/PE)."""
    row_bytes = L * itemsize
    max_rows = max(1, target_bytes // row_bytes)
    if R0 <= max_rows:
        # Whole per-batch slab fits one tile: amortise grid overhead over batch.
        TR = R0
        slab_bytes = R0 * row_bytes
        tb_cap = max(1, target_bytes // max(slab_bytes, 1))
        TB = _largest_divisor_leq(B, tb_cap)
    else:
        TB = 1
        TR = max(g, (max_rows // g) * g)
    # v7x megacore: if the batch axis collapses to a single grid step, make
    # sure the row axis has >=2 steps so both TensorCores get work.
    if B // TB == 1 and R0 >= 2 * g:
        half_rows = ((R0 // 2) // g) * g
        if half_rows >= g:
            TR = min(TR, half_rows)
    return TR, TB


# ---------------------------------------------------------------------------
# Batch-invariant PE, cached per (S, C, dtype) — no re-emitted sin/cos per call
# ---------------------------------------------------------------------------
@functools.lru_cache(maxsize=None)
def _cached_pe_flat(S, C, dtype_name):
    half = C // 2
    k = jnp.arange(half, dtype=jnp.float32)
    inv_freq = jnp.exp(-(2.0 * k / float(C)) * math.log(10000.0))   # 10000^(-2k/C)
    pos = jnp.arange(S, dtype=jnp.float32)
    ang = pos[:, None] * inv_freq[None, :]                          # (S, C/2)
    pe = jnp.concatenate([jnp.sin(ang), jnp.cos(ang)], axis=-1)     # (S, C) f32
    return jnp.asarray(pe, dtype=dtype_name).reshape(S * C)


# ---------------------------------------------------------------------------
# Wrapper
# ---------------------------------------------------------------------------
def summer_pe1d(x):
    """x: (B, S, C) with C even.  Returns x + 1-D sinusoidal positional encoding."""
    B, S, C = x.shape
    assert C % 2 == 0, "channels must be even for this positional encoding"
    itemsize = jnp.dtype(x.dtype).itemsize

    pe_flat = _cached_pe_flat(S, C, jnp.dtype(x.dtype).name)        # (S*C,)

    # Lane-dense folding of the (S, C) plane, padded to a multiple of 128 lanes
    # and to a whole number of row tiles.
    N = S * C
    L, R0 = _plan_lane(N)
    g = _sublane_granule(itemsize)
    TR, TB = _plan_tiles(B, R0, L, itemsize, g)
    R = (-(-R0 // TR)) * TR
    pad = R * L - N

    x2 = x.reshape(B, N)
    if pad:
        x2 = jnp.pad(x2, ((0, 0), (0, pad)))
        pe_flat = jnp.pad(pe_flat, (0, pad))
    x3 = x2.reshape(B, R, L)
    pe2 = pe_flat.reshape(R, L)

    # Row tiles outer, batch tiles inner: the PE block index is constant across
    # the inner batch loop, so its DMA happens once per row tile.
    grid = (R // TR, B // TB)

    out = pl.pallas_call(
        _add_pe_kernel,
        out_shape=jax.ShapeDtypeStruct((B, R, L), x.dtype),
        grid_spec=pltpu.PrefetchScalarGridSpec(
            num_scalar_prefetch=0,
            grid=grid,
            in_specs=[
                pl.BlockSpec((TB, TR, L), lambda r, b: (b, r, 0)),   # x tile
                pl.BlockSpec((TR, L), lambda r, b: (r, 0)),          # PE (batch-invariant)
            ],
            out_specs=pl.BlockSpec((TB, TR, L), lambda r, b: (b, r, 0)),
        ),
        compiler_params=pltpu.CompilerParams(
            dimension_semantics=("parallel", "parallel"),
            vmem_limit_bytes=32 * 1024 * 1024,
        ),
    )(x3, pe2)

    return out.reshape(B, R * L)[:, :N].reshape(B, S, C)


# ---------------------------------------------------------------------------
# Pure-JAX reference (PositionalEncoding1D + Summer)
# ---------------------------------------------------------------------------
def _reference(x):
    B, S, C = x.shape
    half = C // 2
    k = jnp.arange(half, dtype=jnp.float32)
    inv_freq = 1.0 / (10000.0 ** (2.0 * k / C))
    pos = jnp.arange(S, dtype=jnp.float32)
    ang = pos[:, None] * inv_freq[None, :]
    pe = jnp.concatenate([jnp.sin(ang), jnp.cos(ang)], axis=-1).astype(x.dtype)
    return x + jnp.broadcast_to(pe[None], (B, S, C))


if __name__ == "__main__":
    key = jax.random.PRNGKey(0)

    # 1) Primary small case (batch, seq, channels) = (2, 8, 32): collapses to a
    #    single lane-dense (2, 1, 256) block (batch-tiled, one grid step).
    x = jax.random.normal(key, (2, 8, 32), dtype=jnp.float32)
    out = jax.block_until_ready(summer_pe1d(x))
    assert out.shape == x.shape and out.dtype == x.dtype
    assert jnp.allclose(out, _reference(x), atol=1e-5, rtol=1e-5)

    # 2) Padded-fallback case (S*C % 128 != 0): flat plane zero-padded to 128
    #    lanes so stores stay unmasked; pad sliced off after the call.
    x2 = jax.random.normal(jax.random.PRNGKey(0), (1, 12, 20), dtype=jnp.float32)
    out2 = jax.block_until_ready(summer_pe1d(x2))
    assert jnp.allclose(out2, _reference(x2), atol=1e-5, rtol=1e-5)

    # 3) Tiled bf16 case (B == 1): exercises row tiling, the dtype-aware
    #    sublane granule, and the >=2-step row axis for v7x megacore.
    x3 = jax.random.normal(jax.random.PRNGKey(0), (1, 2048, 64), dtype=jnp.bfloat16)
    out3 = jax.block_until_ready(summer_pe1d(x3))
    assert jnp.allclose(out3.astype(jnp.float32),
                        _reference(x3).astype(jnp.float32), atol=2e-2, rtol=2e-2)

    print("KERNEL_OK")
</pallas_src>

<mosaic_0001>
module attributes {stable_mosaic.version = 11 : i64} {
  func.func @_add_pe_kernel(%arg0: i32, %arg1: i32, %arg2: memref<2x1x256xf32, #tpu.memory_space<vmem>>, %arg3: memref<1x256xf32, #tpu.memory_space<vmem>>, %arg4: memref<2x1x256xf32, #tpu.memory_space<vmem>>) attributes {dimension_semantics = [#tpu.dimension_semantics<parallel>, #tpu.dimension_semantics<parallel>], iteration_bounds = array<i64: 1, 1>, scalar_prefetch = 0 : i64, scratch_operands = 0 : i64, tpu.core_type = #tpu.core_type<tc>, window_params = [{transform_indices = @transform_0, window_bounds = array<i64: 2, 1, 256>}, {transform_indices = @transform_1, window_bounds = array<i64: 1, 256>}, {transform_indices = @transform_2, window_bounds = array<i64: 2, 1, 256>}]} {
    %c0 = arith.constant 0 : index
    %c0_0 = arith.constant 0 : index
    %c0_1 = arith.constant 0 : index
    %0 = vector.load %arg2[%c0, %c0_0, %c0_1] : memref<2x1x256xf32, #tpu.memory_space<vmem>>, vector<2x1x256xf32>
    %c0_2 = arith.constant 0 : index
    %c0_3 = arith.constant 0 : index
    %1 = vector.load %arg3[%c0_2, %c0_3] : memref<1x256xf32, #tpu.memory_space<vmem>>, vector<1x256xf32>
    %2 = vector.shape_cast %1 : vector<1x256xf32> to vector<1x1x256xf32>
    %3 = vector.broadcast %2 : vector<1x1x256xf32> to vector<2x1x256xf32>
    %4 = arith.addf %0, %3 : vector<2x1x256xf32>
    %c0_4 = arith.constant 0 : index
    %c0_5 = arith.constant 0 : index
    %c0_6 = arith.constant 0 : index
    %5 = vector.load %arg4[%c0_4, %c0_5, %c0_6] : memref<2x1x256xf32, #tpu.memory_space<vmem>>, vector<2x1x256xf32>
    tpu.vector_store %arg4[%c0_4, %c0_5, %c0_6], %4 {strides = array<i32>} : memref<2x1x256xf32, #tpu.memory_space<vmem>>, vector<2x1x256xf32>,
    return
  }
  func.func @transform_0(%arg0: i32, %arg1: i32) -> (i32, i32, i32) {
    %c0_i32 = arith.constant 0 : i32
    %c0_i32_0 = arith.constant 0 : i32
    return %arg1, %arg0, %c0_i32 : i32, i32, i32
  }
  func.func @transform_1(%arg0: i32, %arg1: i32) -> (i32, i32) {
    %c0_i32 = arith.constant 0 : i32
    %c0_i32_0 = arith.constant 0 : i32
    return %arg0, %c0_i32 : i32, i32
  }
  func.func @transform_2(%arg0: i32, %arg1: i32) -> (i32, i32, i32) {
    %c0_i32 = arith.constant 0 : i32
    %c0_i32_0 = arith.constant 0 : i32
    return %arg1, %arg0, %c0_i32 : i32, i32, i32
  }
}

</mosaic_0001>

<llo_original>
// kernel: tpu_custom_call.1
$region0: #{tpu_custom_call.1}
  #allocation0 [shape = 'u32[]', space=smem, size = 0x4, offset = 0x4, fixed_abs, tag = 'smem constant byte address 0x4 - core index']
  #allocation1 [shape = 'u32[72,128]{1,0:T(1,128)}', space=vmem, size = 0x9000, scoped, tag = 'internal scratch']
  %s0 = inlined_call_operand.hbm [shape: f32[2,1,256], index: 0, kind: input, shape index: {}]
  %s1 = inlined_call_operand.hbm [shape: f32[1,256], index: 1, kind: input, shape index: {}]
  %s2 = inlined_call_operand.hbm [shape: f32[2,1,256], index: 2, kind: output, shape index: {}]
  %s3 = sld [smem:[#allocation0]]
  $region26: #{tpu_custom_call.1} parent=0
    _
  %s5 = ssub.s32 1, %s3
  %s6 = scalar_select 0, %s5, %s3
  $region1: #{tpu_custom_call.1} parent=0
    #allocation2 [shape = 'u8[2048]{0}', space=vmem, size = 0x800, scoped, tag = 'input window, operand 0, single buffered']
    #allocation3 [shape = 's32[1]{0}', space=sflag, size = 0x4, scoped, tag = 'scoped memory for tpu_custom_call.1']
    #allocation4 [shape = 's32[1]{0}', space=sflag, size = 0x4, scoped, tag = 'scoped memory for tpu_custom_call.1']
    #allocation5 [shape = 'u8[1024]{0}', space=vmem, size = 0x400, scoped, tag = 'input window, operand 1, single buffered']
    #allocation6 [shape = 's32[1]{0}', space=sflag, size = 0x4, scoped, tag = 'scoped memory for tpu_custom_call.1']
    #allocation7 [shape = 'u8[2048]{0}', space=vmem, size = 0x800, scoped, tag = 'output window, operand 0, single buffered']
    %7 = vsyncpa [#allocation3], 0
    %8 = vsyncpa [#allocation6], 0
    %9 = vsyncpa [#allocation4], 0
    // Predicated region
    $region2: #{tpu_custom_call.1} parent=1 // pred_check
      _
    $region3: #{tpu_custom_call.1} parent=1 // pred_check_branch
      %11 = sbr.rel (0) target = $region5
    $region4: #{tpu_custom_call.1} parent=1 // pred_region
      %13 = vsyncadd [#allocation3], 0
      %s14 = sshll.u32 %s0, 4
      %s15 = int_to_ptr.hbm [resolvable:$true] %s14
      %s16 = sshll.u32 [#allocation2], 4
      %s17 = int_to_ptr.vmem [resolvable:$true] %s16
      %22 = dma.hbm_to_vmem [thread:$0]  %s15, 64, %s17, [#allocation3], 32, 32, 2
    $region5: #{tpu_custom_call.1} parent=1 // pred_fallthru
      _
    // Predicated region
    $region6: #{tpu_custom_call.1} parent=1 // pred_check
      _
    $region7: #{tpu_custom_call.1} parent=1 // pred_check_branch
      %24 = sbr.rel (0) target = $region9
    $region8: #{tpu_custom_call.1} parent=1 // pred_region
      %26 = vsyncadd [#allocation6], 0
      %s28 = sshll.u32 %s1, 4
      %s29 = int_to_ptr.hbm [resolvable:$true] %s28
      %s30 = sshll.u32 [#allocation5], 4
      %s31 = int_to_ptr.vmem [resolvable:$true] %s30
      %33 = dma.hbm_to_vmem [thread:$0]  %s29, 32, %s31, [#allocation6]
    $region9: #{tpu_custom_call.1} parent=1 // pred_fallthru
      _
    // Predicated region
    $region10: #{tpu_custom_call.1} parent=1 // pred_check
      _
    $region11: #{tpu_custom_call.1} parent=1 // pred_check_branch
      %35 = sbr.rel (0) target = $region13
    $region12: #{tpu_custom_call.1} parent=1 // pred_region
      %37 = dma.done [#allocation3], 64
    $region13: #{tpu_custom_call.1} parent=1 // pred_fallthru
      _
    // Predicated region
    $region14: #{tpu_custom_call.1} parent=1 // pred_check
      _
    $region15: #{tpu_custom_call.1} parent=1 // pred_check_branch
      %39 = sbr.rel (0) target = $region17
    $region16: #{tpu_custom_call.1} parent=1 // pred_region
      %41 = dma.done [#allocation6], 32
    $region17: #{tpu_custom_call.1} parent=1 // pred_fallthru
      _
    %v42 = vld [vmem:[#allocation2] sm:$0x3]
    %v43 = vld [vmem:[#allocation2 + $0x2] sm:$0x3]
    %v44 = vld [vmem:[#allocation5] sm:$0x3]
    %v45 = vadd.f32 %v42, %v44
    %v46 = vadd.f32 %v43, %v44
    %v47 = vlaneseq
    %vm48 = vcmp.ge.s32.totalorder %v47, 0
    %vm49 = vcmp.lt.s32.totalorder %v47, 256
    %vm50 = vmand %vm48, %vm49
    %51 = vst.msk [vmem:[#allocation7] sm:$0x3] %vm50, %v45
    %52 = vst.msk [vmem:[#allocation7 + $0x2] sm:$0x3] %vm50, %v46
    // Predicated region
    $region18: #{tpu_custom_call.1} parent=1 // pred_check
      _
    $region19: #{tpu_custom_call.1} parent=1 // pred_check_branch
      %54 = sbr.rel (0) target = $region21
    $region20: #{tpu_custom_call.1} parent=1 // pred_region
      %56 = vsyncadd [#allocation4], 0
      %s57 = sshll.u32 [#allocation7], 4
      %s58 = int_to_ptr.vmem [resolvable:$true] %s57
      %s59 = sshll.u32 %s2, 4
      %s60 = int_to_ptr.hbm [resolvable:$true] %s59
      %65 = dma.vmem_to_hbm [thread:$0]  %s58, 64, %s60, [#allocation4], 32, 32, 2
    $region21: #{tpu_custom_call.1} parent=1 // pred_fallthru
      _
    // Predicated region
    $region22: #{tpu_custom_call.1} parent=1 // pred_check
      _
    $region23: #{tpu_custom_call.1} parent=1 // pred_check_branch
      %67 = sbr.rel (0) target = $region25
    $region24: #{tpu_custom_call.1} parent=1 // pred_region
      %69 = dma.done [#allocation4], 64
    $region25: #{tpu_custom_call.1} parent=1 // pred_fallthru
      _
    %70 = vsyncpa [#allocation3], 1
    %71 = vsyncpa [#allocation6], 1
    %72 = vsyncpa [#allocation4], 1

</llo_original>
